<compile_context>
chip_gen: v7x
topology: tpu7x:2x2x1
jax: 0.10.0
libtpu: 0.0.40
codegen_flags: <defaults>
</compile_context>

<pallas_src>
import functools

import jax
import jax.numpy as jnp
from jax import lax
from jax.experimental import pallas as pl
from jax.experimental.pallas import tpu as pltpu


def _lane_sum(x, ones_col):
    """(TB, D) -> (TB, 1) lane reduction routed through the MXU."""
    return lax.dot_general(
        x, ones_col,
        dimension_numbers=(((1,), (0,)), ((), ())),
        preferred_element_type=jnp.float32)


def _dino_tile_kernel(t_ref, s_ref, c_ref, loss_ref, csum_ref, *,
                      inv_temp_student, inv_temp_teacher):
    """Per-batch-tile partial reductions for the DINO loss.

    t_ref : (Vt, TB, D)   teacher projections for this batch tile (f32/bf16)
    s_ref : (Vs, TB, D)   student projections for this batch tile (f32/bf16)
    c_ref : (1, D)        current center
    loss_ref : (1, 1, 128) lane-broadcast partial sum_{pairs,rows} p_t . log_p_s
    csum_ref : (1, 1, D)   column sums of teacher views 0 and 1 (center EMA)
    """
    vt = t_ref.shape[0]
    vs = s_ref.shape[0]
    tb = t_ref.shape[1]
    d = t_ref.shape[2]

    # Hoisted constants: MXU reduction column + scaled/broadcast center.
    ones_col = jnp.ones((d, 1), jnp.float32)
    center_b = jnp.broadcast_to(
        c_ref[...].astype(jnp.float32) * inv_temp_teacher, (tb, d))

    # ---- student log-softmax stats, hoisted out of the teacher loop --------
    # log_softmax(z_s)[., j] = zs_shift[., j] - lse ; only these are needed.
    zs_shift = []
    lse = []
    for iv in range(vs):
        zs = s_ref[iv].astype(jnp.float32) * inv_temp_student      # (TB, D)
        sh = zs - jnp.max(zs, axis=1, keepdims=True)               # XLU max
        lse.append(jnp.log(_lane_sum(jnp.exp(sh), ones_col)))      # (TB, 1)
        zs_shift.append(sh)

    # ---- center-EMA column sums, fused into one sublane reduction ----------
    # PyTorch _update_center uses exactly teacher views 0 and 1.
    t0 = t_ref[0].astype(jnp.float32)
    t1 = t_ref[1].astype(jnp.float32)
    csum_ref[...] = jnp.sum(t0 + t1, axis=0, keepdims=True)[None]  # (1, 1, D)

    # ---- teacher softmax + cross terms --------------------------------------
    partial_rows = jnp.zeros((tb, 1), jnp.float32)

    # TODO(synk): for view counts >> 2x2, replace the unrolled pair loop with
    # lax.fori_loop(unroll=True) / a grid axis to bound vreg live ranges.
    for iq in range(vt):
        if iq == 0:
            q = t0
        elif iq == 1:
            q = t1
        else:
            q = t_ref[iq].astype(jnp.float32)
        zt = q * inv_temp_teacher - center_b
        zt_exp = jnp.exp(zt - jnp.max(zt, axis=1, keepdims=True))  # unnormalized
        # TODO(synk): if a bundle dump shows the EUP saturating, consider
        # pl.reciprocal(approx=True) here and re-validate tolerances.
        inv_denom = pl.reciprocal(_lane_sum(zt_exp, ones_col), approx=False)
        for iv in range(vs):
            if iv == iq:
                continue
            # sum_D(p_t * log_p_s) = sum_D(p_t * zs_shift) - lse (sum_D p_t == 1)
            inner = _lane_sum(zt_exp * zs_shift[iv], ones_col)     # MXU
            partial_rows = partial_rows + (inner * inv_denom - lse[iv])

    total = jnp.sum(partial_rows)                                  # tile partial
    loss_ref[...] = jnp.broadcast_to(total, loss_ref.shape).astype(jnp.float32)


def _pick_batch_tile(b, d, vt, vs, in_itemsize=4,
                     vmem_budget_bytes=8 * 1024 * 1024):
    """Largest aligned divisor of b whose working set fits the VMEM budget.

    Accounts for double-buffered inputs at their stored dtype plus the f32
    in-kernel intermediates (zs_shift per student view, zt/zt_exp, partials).
    Also guarantees >= 2 grid tiles when the batch allows it, so the
    "parallel" batch axis can shard across both v7x TensorCores.
    """
    align = 8 * max(1, 4 // int(in_itemsize))      # 8 rows f32, 16 rows bf16
    per_row_bytes = ((vt + vs) * d * int(in_itemsize) * 2      # dbl-buffered in
                     + (vs + 3) * d * 4)                       # f32 intermediates
    cap = max(align, vmem_budget_bytes // max(per_row_bytes, 1))
    if b <= align or b % align != 0:
        # TODO(synk): pad the batch or handle a ragged last tile instead of a
        # single full-batch tile when b is not sublane-aligned.
        return b
    tb = min((cap // align) * align, b)
    if b >= 2 * align:
        tb = min(tb, (b // 2 // align) * align)    # >= 2 tiles (v7x megacore)
    tb = max(tb, align)
    while b % tb != 0:
        tb -= align
    return tb


def dino_loss(teacher_views, student_views, center, *,
              temp_student, temp_teacher, center_momentum,
              tile_b=None, vmem_limit_bytes=None,
              vmem_budget_bytes=8 * 1024 * 1024):
    """teacher_views/student_views: [V, B, D] (f32 or bf16); center: [1, D] f32.

    Returns (loss, new_center) matching DINOLoss.forward (new_center is the
    EMA-updated buffer value; returned instead of mutated in place).
    """
    vt, b, d = teacher_views.shape
    vs, bs, ds_ = student_views.shape
    assert bs == b and ds_ == d
    assert vt >= 2, "DINO center update needs at least two teacher views"

    in_itemsize = max(jnp.dtype(teacher_views.dtype).itemsize,
                      jnp.dtype(student_views.dtype).itemsize)
    if tile_b is None:
        tb = _pick_batch_tile(b, d, vt, vs, in_itemsize, vmem_budget_bytes)
    else:
        tb = int(tile_b)
    assert b % tb == 0, (b, tb)
    num_tiles = b // tb
    n_terms = sum(1 for iq in range(vt) for iv in range(vs) if iv != iq)

    kernel = functools.partial(
        _dino_tile_kernel,
        inv_temp_student=1.0 / float(temp_student),
        inv_temp_teacher=1.0 / float(temp_teacher),
    )

    compiler_kwargs = dict(dimension_semantics=("parallel",))
    if vmem_limit_bytes is not None:
        # e.g. raise toward 64-96 MiB on v6e (128 MiB phys); keep the per-tile
        # footprint well under 64 MiB on v7x.
        compiler_kwargs["vmem_limit_bytes"] = int(vmem_limit_bytes)

    loss_partials, csum_partials = pl.pallas_call(
        kernel,
        out_shape=(
            jax.ShapeDtypeStruct((num_tiles, 1, 128), jnp.float32),
            jax.ShapeDtypeStruct((num_tiles, 1, d), jnp.float32),
        ),
        grid=(num_tiles,),
        in_specs=[
            pl.BlockSpec((vt, tb, d), lambda i: (0, i, 0)),
            pl.BlockSpec((vs, tb, d), lambda i: (0, i, 0)),
            pl.BlockSpec((1, d), lambda i: (0, 0)),
        ],
        out_specs=(
            pl.BlockSpec((1, 1, 128), lambda i: (i, 0, 0)),
            pl.BlockSpec((1, 1, d), lambda i: (i, 0, 0)),
        ),
        compiler_params=pltpu.CompilerParams(**compiler_kwargs),
    )(teacher_views, student_views, center)

    # Tiny final reductions + EMA in plain XLA (the -1/B and 1/n_terms scales
    # are folded into one final scale here).
    loss = -jnp.sum(loss_partials[:, 0, 0]) / jnp.float32(b * n_terms)
    batch_mean = jnp.sum(csum_partials[:, 0, :], axis=0,
                         keepdims=True) / jnp.float32(2 * b)
    new_center = center_momentum * center + (1.0 - center_momentum) * batch_mean
    return loss, new_center


def _reference(teacher_views, student_views, center,
               temp_student, temp_teacher, center_momentum):
    """Pure-JAX reference mirroring the PyTorch module (f32 math)."""
    teacher_views = teacher_views.astype(jnp.float32)
    student_views = student_views.astype(jnp.float32)
    total = 0.0
    n = 0
    for iq in range(teacher_views.shape[0]):
        q = teacher_views[iq]
        p_t = jax.nn.softmax((q - center) / temp_teacher, axis=1)
        for iv in range(student_views.shape[0]):
            if iv == iq:
                continue
            log_p_s = jax.nn.log_softmax(student_views[iv] / temp_student, axis=1)
            total = total + (-(p_t * log_p_s).sum(axis=1).mean())
            n += 1
    total = total / n
    cat_mean = jnp.concatenate(
        [teacher_views[0], teacher_views[1]], axis=0).mean(axis=0, keepdims=True)
    new_center = center_momentum * center + (1 - center_momentum) * cat_mean
    return total, new_center


if __name__ == "__main__":
    # Module hyperparameters (deterministic, in-script).
    projection_dim = 128
    temp_student = 0.1
    temp_teacher = 0.04
    center_momentum = 0.5

    batch = 16
    n_teacher_views = 2
    n_student_views = 2

    key = jax.random.PRNGKey(0)
    kt, ks = jax.random.split(key)
    teacher_views = jax.random.normal(
        kt, (n_teacher_views, batch, projection_dim), dtype=jnp.float32)
    student_views = jax.random.normal(
        ks, (n_student_views, batch, projection_dim), dtype=jnp.float32)
    # register_buffer('center', torch.zeros(1, projection_dim))
    center = jnp.zeros((1, projection_dim), dtype=jnp.float32)

    ref_loss, ref_center = _reference(
        teacher_views, student_views, center,
        temp_student, temp_teacher, center_momentum)

    # Auto tile size: tb=8 -> 2 parallel tiles (exercises the multi-tile path
    # and v7x 2-TC sharding by default).
    loss, new_center = dino_loss(
        teacher_views, student_views, center,
        temp_student=temp_student,
        temp_teacher=temp_teacher,
        center_momentum=center_momentum,
    )
    jax.block_until_ready((loss, new_center))
    assert jnp.allclose(loss, ref_loss, rtol=1e-5, atol=1e-5), (loss, ref_loss)
    assert jnp.allclose(new_center, ref_center, rtol=1e-5, atol=1e-5)

    # Explicit single full-batch tile.
    loss2, new_center2 = dino_loss(
        teacher_views, student_views, center,
        temp_student=temp_student,
        temp_teacher=temp_teacher,
        center_momentum=center_momentum,
        tile_b=batch,
    )
    jax.block_until_ready((loss2, new_center2))
    assert jnp.allclose(loss2, ref_loss, rtol=1e-5, atol=1e-5), (loss2, ref_loss)
    assert jnp.allclose(new_center2, ref_center, rtol=1e-5, atol=1e-5)

    # bf16 inputs (halved HBM traffic); kernel upcasts to f32 internally.
    teacher_bf16 = teacher_views.astype(jnp.bfloat16)
    student_bf16 = student_views.astype(jnp.bfloat16)
    ref_loss_b, ref_center_b = _reference(
        teacher_bf16, student_bf16, center,
        temp_student, temp_teacher, center_momentum)
    loss3, new_center3 = dino_loss(
        teacher_bf16, student_bf16, center,
        temp_student=temp_student,
        temp_teacher=temp_teacher,
        center_momentum=center_momentum,
    )
    jax.block_until_ready((loss3, new_center3))
    assert jnp.allclose(loss3, ref_loss_b, rtol=1e-5, atol=1e-5), (loss3, ref_loss_b)
    assert jnp.allclose(new_center3, ref_center_b, rtol=1e-5, atol=1e-5)

    print("KERNEL_OK")
</pallas_src>

<mosaic_0001>
module attributes {stable_mosaic.version = 11 : i64} {
  func.func @_dino_tile_kernel(%arg0: i32, %arg1: memref<2x8x128xf32, #tpu.memory_space<vmem>>, %arg2: memref<2x8x128xf32, #tpu.memory_space<vmem>>, %arg3: memref<1x128xf32, #tpu.memory_space<vmem>>, %arg4: memref<1x1x128xf32, #tpu.memory_space<vmem>>, %arg5: memref<1x1x128xf32, #tpu.memory_space<vmem>>) attributes {dimension_semantics = [#tpu.dimension_semantics<parallel>], iteration_bounds = array<i64: 2>, scalar_prefetch = 0 : i64, scratch_operands = 0 : i64, tpu.core_type = #tpu.core_type<tc>, window_params = [{transform_indices = @transform_0, window_bounds = array<i64: 2, 8, 128>}, {transform_indices = @transform_1, window_bounds = array<i64: 2, 8, 128>}, {pipeline_mode = #tpu.pipeline_mode<synchronous>, transform_indices = @transform_2, window_bounds = array<i64: 1, 128>}, {transform_indices = @transform_3, window_bounds = array<i64: 1, 1, 128>}, {transform_indices = @transform_4, window_bounds = array<i64: 1, 1, 128>}]} {
    %cst = arith.constant 1.000000e+00 : f32
    %0 = vector.broadcast %cst : f32 to vector<128x1xf32>
    %c0 = arith.constant 0 : index
    %c0_0 = arith.constant 0 : index
    %1 = vector.load %arg3[%c0, %c0_0] : memref<1x128xf32, #tpu.memory_space<vmem>>, vector<1x128xf32>
    %cst_1 = arith.constant 2.500000e+01 : f32
    %2 = vector.broadcast %cst_1 : f32 to vector<1x128xf32>
    %3 = arith.mulf %1, %2 : vector<1x128xf32>
    %4 = vector.shape_cast %3 : vector<1x128xf32> to vector<1x128xf32>
    %5 = vector.broadcast %4 : vector<1x128xf32> to vector<8x128xf32>
    %c0_2 = arith.constant 0 : index
    %c0_3 = arith.constant 0 : index
    %c0_4 = arith.constant 0 : index
    %6 = vector.load %arg2[%c0_2, %c0_3, %c0_4] : memref<2x8x128xf32, #tpu.memory_space<vmem>>, vector<1x8x128xf32>
    %7 = vector.shape_cast %6 : vector<1x8x128xf32> to vector<8x128xf32>
    %cst_5 = arith.constant 1.000000e+01 : f32
    %8 = vector.broadcast %cst_5 : f32 to vector<8x128xf32>
    %9 = arith.mulf %7, %8 : vector<8x128xf32>
    %cst_6 = arith.constant dense<0xFF800000> : vector<8xf32>
    %10 = vector.multi_reduction <maximumf>, %9, %cst_6 [1] : vector<8x128xf32> to vector<8xf32>
    %11 = vector.shape_cast %10 : vector<8xf32> to vector<8x1xf32>
    %12 = vector.broadcast %11 : vector<8x1xf32> to vector<8x128xf32>
    %13 = arith.subf %9, %12 : vector<8x128xf32>
    %14 = math.exp %13 : vector<8x128xf32>
    %cst_7 = arith.constant dense<0.000000e+00> : vector<8x1xf32>
    %15 = tpu.matmul %14, %0, %cst_7 {dimension_numbers = #tpu.dot_dimension_numbers<[1], [0], [0], [1], [0, 0, 1, 1], [], []>} : vector<8x128xf32>, vector<128x1xf32>, vector<8x1xf32> -> vector<8x1xf32>
    %16 = math.log %15 : vector<8x1xf32>
    %c1 = arith.constant 1 : index
    %c0_8 = arith.constant 0 : index
    %c0_9 = arith.constant 0 : index
    %17 = vector.load %arg2[%c1, %c0_8, %c0_9] : memref<2x8x128xf32, #tpu.memory_space<vmem>>, vector<1x8x128xf32>
    %18 = vector.shape_cast %17 : vector<1x8x128xf32> to vector<8x128xf32>
    %cst_10 = arith.constant 1.000000e+01 : f32
    %19 = vector.broadcast %cst_10 : f32 to vector<8x128xf32>
    %20 = arith.mulf %18, %19 : vector<8x128xf32>
    %cst_11 = arith.constant dense<0xFF800000> : vector<8xf32>
    %21 = vector.multi_reduction <maximumf>, %20, %cst_11 [1] : vector<8x128xf32> to vector<8xf32>
    %22 = vector.shape_cast %21 : vector<8xf32> to vector<8x1xf32>
    %23 = vector.broadcast %22 : vector<8x1xf32> to vector<8x128xf32>
    %24 = arith.subf %20, %23 : vector<8x128xf32>
    %25 = math.exp %24 : vector<8x128xf32>
    %cst_12 = arith.constant dense<0.000000e+00> : vector<8x1xf32>
    %26 = tpu.matmul %25, %0, %cst_12 {dimension_numbers = #tpu.dot_dimension_numbers<[1], [0], [0], [1], [0, 0, 1, 1], [], []>} : vector<8x128xf32>, vector<128x1xf32>, vector<8x1xf32> -> vector<8x1xf32>
    %27 = math.log %26 : vector<8x1xf32>
    %c0_13 = arith.constant 0 : index
    %c0_14 = arith.constant 0 : index
    %c0_15 = arith.constant 0 : index
    %28 = vector.load %arg1[%c0_13, %c0_14, %c0_15] : memref<2x8x128xf32, #tpu.memory_space<vmem>>, vector<1x8x128xf32>
    %29 = vector.shape_cast %28 : vector<1x8x128xf32> to vector<8x128xf32>
    %c1_16 = arith.constant 1 : index
    %c0_17 = arith.constant 0 : index
    %c0_18 = arith.constant 0 : index
    %30 = vector.load %arg1[%c1_16, %c0_17, %c0_18] : memref<2x8x128xf32, #tpu.memory_space<vmem>>, vector<1x8x128xf32>
    %31 = vector.shape_cast %30 : vector<1x8x128xf32> to vector<8x128xf32>
    %32 = arith.addf %29, %31 : vector<8x128xf32>
    %cst_19 = arith.constant dense<0.000000e+00> : vector<128xf32>
    %33 = vector.multi_reduction <add>, %32, %cst_19 [0] : vector<8x128xf32> to vector<128xf32>
    %34 = vector.shape_cast %33 : vector<128xf32> to vector<1x128xf32>
    %35 = vector.shape_cast %34 : vector<1x128xf32> to vector<1x1x128xf32>
    %c0_20 = arith.constant 0 : index
    %c0_21 = arith.constant 0 : index
    %c0_22 = arith.constant 0 : index
    %36 = vector.load %arg5[%c0_20, %c0_21, %c0_22] : memref<1x1x128xf32, #tpu.memory_space<vmem>>, vector<1x1x128xf32>
    tpu.vector_store %arg5[%c0_20, %c0_21, %c0_22], %35 {strides = array<i32>} : memref<1x1x128xf32, #tpu.memory_space<vmem>>, vector<1x1x128xf32>,
    %cst_23 = arith.constant 0.000000e+00 : f32
    %37 = vector.broadcast %cst_23 : f32 to vector<8x1xf32>
    %cst_24 = arith.constant 2.500000e+01 : f32
    %38 = vector.broadcast %cst_24 : f32 to vector<8x128xf32>
    %39 = arith.mulf %29, %38 : vector<8x128xf32>
    %40 = arith.subf %39, %5 : vector<8x128xf32>
    %cst_25 = arith.constant dense<0xFF800000> : vector<8xf32>
    %41 = vector.multi_reduction <maximumf>, %40, %cst_25 [1] : vector<8x128xf32> to vector<8xf32>
    %42 = vector.shape_cast %41 : vector<8xf32> to vector<8x1xf32>
    %43 = vector.broadcast %42 : vector<8x1xf32> to vector<8x128xf32>
    %44 = arith.subf %40, %43 : vector<8x128xf32>
    %45 = math.exp %44 : vector<8x128xf32>
    %cst_26 = arith.constant dense<0.000000e+00> : vector<8x1xf32>
    %46 = tpu.matmul %45, %0, %cst_26 {dimension_numbers = #tpu.dot_dimension_numbers<[1], [0], [0], [1], [0, 0, 1, 1], [], []>} : vector<8x128xf32>, vector<128x1xf32>, vector<8x1xf32> -> vector<8x1xf32>
    %47 = tpu.reciprocal %46 : vector<8x1xf32> -> vector<8x1xf32>
    %48 = arith.mulf %45, %24 : vector<8x128xf32>
    %cst_27 = arith.constant dense<0.000000e+00> : vector<8x1xf32>
    %49 = tpu.matmul %48, %0, %cst_27 {dimension_numbers = #tpu.dot_dimension_numbers<[1], [0], [0], [1], [0, 0, 1, 1], [], []>} : vector<8x128xf32>, vector<128x1xf32>, vector<8x1xf32> -> vector<8x1xf32>
    %50 = arith.mulf %49, %47 : vector<8x1xf32>
    %51 = arith.subf %50, %27 : vector<8x1xf32>
    %52 = arith.addf %37, %51 : vector<8x1xf32>
    %cst_28 = arith.constant 2.500000e+01 : f32
    %53 = vector.broadcast %cst_28 : f32 to vector<8x128xf32>
    %54 = arith.mulf %31, %53 : vector<8x128xf32>
    %55 = arith.subf %54, %5 : vector<8x128xf32>
    %cst_29 = arith.constant dense<0xFF800000> : vector<8xf32>
    %56 = vector.multi_reduction <maximumf>, %55, %cst_29 [1] : vector<8x128xf32> to vector<8xf32>
    %57 = vector.shape_cast %56 : vector<8xf32> to vector<8x1xf32>
    %58 = vector.broadcast %57 : vector<8x1xf32> to vector<8x128xf32>
    %59 = arith.subf %55, %58 : vector<8x128xf32>
    %60 = math.exp %59 : vector<8x128xf32>
    %cst_30 = arith.constant dense<0.000000e+00> : vector<8x1xf32>
    %61 = tpu.matmul %60, %0, %cst_30 {dimension_numbers = #tpu.dot_dimension_numbers<[1], [0], [0], [1], [0, 0, 1, 1], [], []>} : vector<8x128xf32>, vector<128x1xf32>, vector<8x1xf32> -> vector<8x1xf32>
    %62 = tpu.reciprocal %61 : vector<8x1xf32> -> vector<8x1xf32>
    %63 = arith.mulf %60, %13 : vector<8x128xf32>
    %cst_31 = arith.constant dense<0.000000e+00> : vector<8x1xf32>
    %64 = tpu.matmul %63, %0, %cst_31 {dimension_numbers = #tpu.dot_dimension_numbers<[1], [0], [0], [1], [0, 0, 1, 1], [], []>} : vector<8x128xf32>, vector<128x1xf32>, vector<8x1xf32> -> vector<8x1xf32>
    %65 = arith.mulf %64, %62 : vector<8x1xf32>
    %66 = arith.subf %65, %16 : vector<8x1xf32>
    %67 = arith.addf %52, %66 : vector<8x1xf32>
    %68 = vector.shape_cast %67 : vector<8x1xf32> to vector<1x8x1xf32>
    %cst_32 = arith.constant dense<0.000000e+00> : vector<1xf32>
    %69 = vector.multi_reduction <add>, %68, %cst_32 [1, 2] : vector<1x8x1xf32> to vector<1xf32>
    %70 = vector.shape_cast %69 : vector<1xf32> to vector<1x1x1xf32>
    %71 = vector.extract %70[0, 0, 0] : f32 from vector<1x1x1xf32>
    %72 = vector.broadcast %71 : f32 to vector<1x1x128xf32>
    %c0_33 = arith.constant 0 : index
    %c0_34 = arith.constant 0 : index
    %c0_35 = arith.constant 0 : index
    %73 = vector.load %arg4[%c0_33, %c0_34, %c0_35] : memref<1x1x128xf32, #tpu.memory_space<vmem>>, vector<1x1x128xf32>
    tpu.vector_store %arg4[%c0_33, %c0_34, %c0_35], %72 {strides = array<i32>} : memref<1x1x128xf32, #tpu.memory_space<vmem>>, vector<1x1x128xf32>,
    return
  }
  func.func @transform_0(%arg0: i32) -> (i32, i32, i32) {
    %c0_i32 = arith.constant 0 : i32
    %c0_i32_0 = arith.constant 0 : i32
    %c0_i32_1 = arith.constant 0 : i32
    return %c0_i32, %arg0, %c0_i32_0 : i32, i32, i32
  }
  func.func @transform_1(%arg0: i32) -> (i32, i32, i32) {
    %c0_i32 = arith.constant 0 : i32
    %c0_i32_0 = arith.constant 0 : i32
    %c0_i32_1 = arith.constant 0 : i32
    return %c0_i32, %arg0, %c0_i32_0 : i32, i32, i32
  }
  func.func @transform_2(%arg0: i32) -> (i32, i32) {
    %c0_i32 = arith.constant 0 : i32
    %c0_i32_0 = arith.constant 0 : i32
    %c0_i32_1 = arith.constant 0 : i32
    return %c0_i32, %c0_i32_0 : i32, i32
  }
  func.func @transform_3(%arg0: i32) -> (i32, i32, i32) {
    %c0_i32 = arith.constant 0 : i32
    %c0_i32_0 = arith.constant 0 : i32
    %c0_i32_1 = arith.constant 0 : i32
    return %arg0, %c0_i32, %c0_i32_0 : i32, i32, i32
  }
  func.func @transform_4(%arg0: i32) -> (i32, i32, i32) {
    %c0_i32 = arith.constant 0 : i32
    %c0_i32_0 = arith.constant 0 : i32
    %c0_i32_1 = arith.constant 0 : i32
    return %arg0, %c0_i32, %c0_i32_0 : i32, i32, i32
  }
}

</mosaic_0001>

<llo_original>
// kernel: tpu_custom_call.1
$region0: #{tpu_custom_call.1}
  #allocation0 [shape = 'u32[]', space=smem, size = 0x4, offset = 0x4, fixed_abs, tag = 'smem constant byte address 0x4 - core index']
  #allocation1 [shape = 'u32[144,128]{1,0:T(1,128)}', space=vmem, size = 0x12000, scoped, tag = 'internal scratch']
  %s0 = inlined_call_operand.hbm [shape: f32[2,16,128], index: 0, kind: input, shape index: {}]
  %s1 = inlined_call_operand.hbm [shape: f32[2,16,128], index: 1, kind: input, shape index: {}]
  %s2 = inlined_call_operand.vmem [shape: f32[1,128], index: 2, kind: input, shape index: {}]
  %s3 = inlined_call_operand.hbm [shape: f32[2,1,128], index: 3, kind: output, shape index: {0}]
  %s4 = inlined_call_operand.hbm [shape: f32[2,1,128], index: 4, kind: output, shape index: {1}]
  %5 = xla_tuple %s3, %s4
  %s6 = sld [smem:[#allocation0]]
  $region61: #{tpu_custom_call.1} parent=0
    _
  %s8 = ssub.s32 1, %s6
  %s9 = scalar_select 0, %s8, %s6
  $region1: #{tpu_custom_call.1} parent=0
    #allocation2 [shape = 'u8[16384]{0}', space=vmem, size = 0x4000, scoped, tag = 'input window, operand 0']
    #allocation3 [shape = 's32[2]{0}', space=sflag, size = 0x8, scoped, tag = 'scoped memory for tpu_custom_call.1']
    #allocation4 [shape = 's32[2]{0}', space=sflag, size = 0x8, scoped, tag = 'scoped memory for tpu_custom_call.1']
    #allocation5 [shape = 'u8[16384]{0}', space=vmem, size = 0x4000, scoped, tag = 'input window, operand 1']
    #allocation6 [shape = 's32[2]{0}', space=sflag, size = 0x8, scoped, tag = 'scoped memory for tpu_custom_call.1']
    #allocation7 [shape = 'u8[1024]{0}', space=vmem, size = 0x400, scoped, tag = 'output window, operand 0']
    #allocation8 [shape = 'u8[1024]{0}', space=vmem, size = 0x400, scoped, tag = 'output window, operand 1']
    #allocation9 [shape = 's32[2]{0}', space=sflag, size = 0x8, scoped, tag = 'scoped memory for tpu_custom_call.1']
    %10 = vsyncpa [#allocation3], 0
    %s11 = scalar_lea.sflag [#allocation3], 1
    %12 = vsyncpa %s11, 0
    %13 = vsyncpa [#allocation6], 0
    %s14 = scalar_lea.sflag [#allocation6], 1
    %15 = vsyncpa %s14, 0
    %16 = vsyncpa [#allocation4], 0
    %s17 = scalar_lea.sflag [#allocation4], 1
    %18 = vsyncpa %s17, 0
    %19 = vsyncpa [#allocation9], 0
    %s20 = scalar_lea.sflag [#allocation9], 1
    %21 = vsyncpa %s20, 0
    loop: start=0, step=1, limit=4
    $region2: #{tpu_custom_call.1} parent=1 // loop_pre_header
      _
    $region3: #{tpu_custom_call.1} parent=1 // loop_header
      %s23 = sphi 0, %s27
      %p24 = scmp.ge.s32.totalorder %s23, 4
      %s33 = sphi 0, %s35
      %s36 = sphi 0, %s33
      %s37 = sphi 0, %s36
      %s53 = sphi 0, %s37
      %s59 = sphi 0, %s61
      %s62 = sphi 0, %s59
      %s63 = sphi 0, %s62
      %s79 = sphi 0, %s63
      %s83 = sphi 0, %s83
      %s85 = sphi 0, %s83
      %s86 = sphi 0, %s85
      %s100 = sphi 0, %s86
      %s106 = sphi 0, %s108
      %s109 = sphi 0, %s106
      %s110 = sphi 0, %s109
      %s126 = sphi 0, %s110
      %s132 = sphi 0, %s134
      %s135 = sphi 0, %s132
      %s136 = sphi 0, %s135
      %s152 = sphi 0, %s136
    $region4: #{tpu_custom_call.1} parent=1 // loop_header_branch
      %26 = sbr.rel (%p24) target = $region8
    $region5: #{tpu_custom_call.1} parent=1 // loop_body
      %s28 = ssub.s32 %s23, 1
      %s29 = ssub.s32 %s23, 2
      %s30 = sadd.s32 %s23, 1
      %s31 = ssub.s32 %s23, %s30
      %p32 = scmp.eq.s32.totalorder %s31, 0
      %s34 = sadd.s32 %s33, 1
      %s35 = scalar_select %p32, %s33, %s34
      %p38 = pneg %p32
      %p39 = scmp.eq.s32.totalorder %s23, 1
      %p40 = por %p38, %p39
      %p41 = scmp.ne.s32.totalorder %s33, %s36
      %p42 = scmp.eq.s32.totalorder %s23, 0
      %p43 = por %p41, %p42
      %p44 = scmp.ne.s32.totalorder %s33, %s36
      %p45 = scmp.eq.s32.totalorder %s28, 1
      %p46 = por %p44, %p45
      %p47 = scmp.ne.s32.totalorder %s36, %s37
      %p48 = scmp.eq.s32.totalorder %s28, 0
      %p49 = por %p47, %p48
      %p50 = scmp.ne.s32.totalorder %s36, %s37
      %p51 = scmp.eq.s32.totalorder %s29, 1
      %p52 = por %p50, %p51
      %p54 = scmp.ne.s32.totalorder %s37, %s53
      %p55 = scmp.eq.s32.totalorder %s29, 0
      %p56 = por %p54, %p55
      %s57 = ssub.s32 %s23, %s30
      %p58 = scmp.eq.s32.totalorder %s57, 0
      %s60 = sadd.s32 %s59, 1
      %s61 = scalar_select %p58, %s59, %s60
      %p64 = pneg %p58
      %p65 = scmp.eq.s32.totalorder %s23, 1
      %p66 = por %p64, %p65
      %p67 = scmp.ne.s32.totalorder %s59, %s62
      %p68 = scmp.eq.s32.totalorder %s23, 0
      %p69 = por %p67, %p68
      %p70 = scmp.ne.s32.totalorder %s59, %s62
      %p71 = scmp.eq.s32.totalorder %s28, 1
      %p72 = por %p70, %p71
      %p73 = scmp.ne.s32.totalorder %s62, %s63
      %p74 = scmp.eq.s32.totalorder %s28, 0
      %p75 = por %p73, %p74
      %p76 = scmp.ne.s32.totalorder %s62, %s63
      %p77 = scmp.eq.s32.totalorder %s29, 1
      %p78 = por %p76, %p77
      %p80 = scmp.ne.s32.totalorder %s63, %s79
      %p81 = scmp.eq.s32.totalorder %s29, 0
      %p82 = por %p80, %p81
      %s84 = sadd.s32 %s83, 1
      %p87 = scmp.eq.s32.totalorder %s23, 1
      %p88 = scmp.ne.s32.totalorder %s83, %s85
      %p89 = scmp.eq.s32.totalorder %s23, 0
      %p90 = por %p88, %p89
      %p91 = scmp.ne.s32.totalorder %s83, %s85
      %p92 = scmp.eq.s32.totalorder %s28, 1
      %p93 = por %p91, %p92
      %p94 = scmp.ne.s32.totalorder %s85, %s86
      %p95 = scmp.eq.s32.totalorder %s28, 0
      %p96 = por %p94, %p95
      %p97 = scmp.ne.s32.totalorder %s85, %s86
      %p98 = scmp.eq.s32.totalorder %s29, 1
      %p99 = por %p97, %p98
      %p101 = scmp.ne.s32.totalorder %s86, %s100
      %p102 = scmp.eq.s32.totalorder %s29, 0
      %p103 = por %p101, %p102
      %s104 = ssub.s32 %s23, %s30
      %p105 = scmp.eq.s32.totalorder %s104, 0
      %s107 = sadd.s32 %s106, 1
      %s108 = scalar_select %p105, %s106, %s107
      %p111 = pneg %p105
      %p112 = scmp.eq.s32.totalorder %s23, 1
      %p113 = por %p111, %p112
      %p114 = scmp.ne.s32.totalorder %s106, %s109
      %p115 = scmp.eq.s32.totalorder %s23, 0
      %p116 = por %p114, %p115
      %p117 = scmp.ne.s32.totalorder %s106, %s109
      %p118 = scmp.eq.s32.totalorder %s28, 1
      %p119 = por %p117, %p118
      %p120 = scmp.ne.s32.totalorder %s109, %s110
      %p121 = scmp.eq.s32.totalorder %s28, 0
      %p122 = por %p120, %p121
      %p123 = scmp.ne.s32.totalorder %s109, %s110
      %p124 = scmp.eq.s32.totalorder %s29, 1
      %p125 = por %p123, %p124
      %p127 = scmp.ne.s32.totalorder %s110, %s126
      %p128 = scmp.eq.s32.totalorder %s29, 0
      %p129 = por %p127, %p128
      %s130 = ssub.s32 %s23, %s30
      %p131 = scmp.eq.s32.totalorder %s130, 0
      %s133 = sadd.s32 %s132, 1
      %s134 = scalar_select %p131, %s132, %s133
      %p137 = pneg %p131
      %p138 = scmp.eq.s32.totalorder %s23, 1
      %p139 = por %p137, %p138
      %p140 = scmp.ne.s32.totalorder %s132, %s135
      %p141 = scmp.eq.s32.totalorder %s23, 0
      %p142 = por %p140, %p141
      %p143 = scmp.ne.s32.totalorder %s132, %s135
      %p144 = scmp.eq.s32.totalorder %s28, 1
      %p145 = por %p143, %p144
      %p146 = scmp.ne.s32.totalorder %s135, %s136
      %p147 = scmp.eq.s32.totalorder %s28, 0
      %p148 = por %p146, %p147
      %p149 = scmp.ne.s32.totalorder %s135, %s136
      %p150 = scmp.eq.s32.totalorder %s29, 1
      %p151 = por %p149, %p150
      %p153 = scmp.ne.s32.totalorder %s136, %s152
      %p154 = scmp.eq.s32.totalorder %s29, 0
      %p155 = por %p153, %p154
      %p156 = scmp.le.s32.totalorder 1, %s23
      %p157 = scmp.lt.s32.totalorder %s23, 3
      %p158 = pnand %p156, %p157
      %p159 = pneg %p158
      // Predicated region
      $region9: #{tpu_custom_call.1} parent=5 // pred_check
        _
      $region10: #{tpu_custom_call.1} parent=5 // pred_check_branch
        %161 = sbr.rel (%p158) target = $region12
      $region11: #{tpu_custom_call.1} parent=5 // pred_region
        %s162 = ssub.s32 %s23, 1
        // Predicated region
        $region13: #{tpu_custom_call.1} parent=11 // pred_check
          %p163 = pneg %p96
        $region14: #{tpu_custom_call.1} parent=11 // pred_check_branch
          %165 = sbr.rel (%p163) target = $region16
        $region15: #{tpu_custom_call.1} parent=11 // pred_region
          _
        $region16: #{tpu_custom_call.1} parent=11 // pred_fallthru
          _
      $region12: #{tpu_custom_call.1} parent=5 // pred_fallthru
        _
      %p166 = scmp.lt.s32.totalorder %s23, 2
      // Predicated region
      $region17: #{tpu_custom_call.1} parent=5 // pred_check
        %p167 = pneg %p166
      $region18: #{tpu_custom_call.1} parent=5 // pred_check_branch
        %169 = sbr.rel (%p167) target = $region20
      $region19: #{tpu_custom_call.1} parent=5 // pred_region
        // Predicated region
        $region21: #{tpu_custom_call.1} parent=19 // pred_check
          %p170 = pneg %p43
        $region22: #{tpu_custom_call.1} parent=19 // pred_check_branch
          %172 = sbr.rel (%p170) target = $region24
        $region23: #{tpu_custom_call.1} parent=19 // pred_region
          %s173 = sand.u32 %s33, 1
          %s174 = scalar_lea.sflag [#allocation3], %s173
          %s175 = sand.u32 %s33, 1
          %s176 = smul.addr %s175, 16
          %s177 = scalar_lea.vmem [#allocation2], %s176
          %s179 = ssub.s32 256, 256
          %180 = vsyncadd %s174, %s179
          %s181 = smul.addr %s23, 128
          %s182 = scalar_lea.hbm %s0, %s181
          %s183 = sshll.u32 %s177, 4
          %s184 = int_to_ptr.vmem [resolvable:$true] %s183
          %189 = dma.hbm_to_vmem [thread:$0]  %s182, 256, %s184, %s174, 256, 128, 8
        $region24: #{tpu_custom_call.1} parent=19 // pred_fallthru
          _
        // Predicated region
        $region25: #{tpu_custom_call.1} parent=19 // pred_check
          %p190 = pneg %p69
        $region26: #{tpu_custom_call.1} parent=19 // pred_check_branch
          %192 = sbr.rel (%p190) target = $region28
        $region27: #{tpu_custom_call.1} parent=19 // pred_region
          %s193 = sand.u32 %s59, 1
          %s194 = scalar_lea.sflag [#allocation6], %s193
          %s195 = sand.u32 %s59, 1
          %s196 = smul.addr %s195, 16
          %s197 = scalar_lea.vmem [#allocation5], %s196
          %s199 = ssub.s32 256, 256
          %200 = vsyncadd %s194, %s199
          %s201 = smul.addr %s23, 128
          %s202 = scalar_lea.hbm %s1, %s201
          %s203 = sshll.u32 %s197, 4
          %s204 = int_to_ptr.vmem [resolvable:$true] %s203
          %209 = dma.hbm_to_vmem [thread:$0]  %s202, 256, %s204, %s194, 256, 128, 8
        $region28: #{tpu_custom_call.1} parent=19 // pred_fallthru
          _
      $region20: #{tpu_custom_call.1} parent=5 // pred_fallthru
        _
      %p210 = scmp.le.s32.totalorder 1, %s23
      %p211 = scmp.lt.s32.totalorder %s23, 3
      %p212 = pnand %p210, %p211
      %p213 = pneg %p212
      // Predicated region
      $region29: #{tpu_custom_call.1} parent=5 // pred_check
        _
      $region30: #{tpu_custom_call.1} parent=5 // pred_check_branch
        %215 = sbr.rel (%p212) target = $region32
      $region31: #{tpu_custom_call.1} parent=5 // pred_region
        %s216 = ssub.s32 %s23, 1
        %s217 = sand.u32 %s36, 1
        %s218 = scalar_lea.sflag [#allocation3], %s217
        %s219 = sand.u32 %s36, 1
        %s220 = smul.addr %s219, 16
        %s221 = scalar_lea.vmem [#allocation2], %s220
        // Predicated region
        $region33: #{tpu_custom_call.1} parent=31 // pred_check
          %p222 = pneg %p49
        $region34: #{tpu_custom_call.1} parent=31 // pred_check_branch
          %224 = sbr.rel (%p222) target = $region36
        $region35: #{tpu_custom_call.1} parent=31 // pred_region
          %225 = dma.done %s218, 256
        $region36: #{tpu_custom_call.1} parent=31 // pred_fallthru
          _
        %s226 = sand.u32 %s62, 1
        %s227 = scalar_lea.sflag [#allocation6], %s226
        %s228 = sand.u32 %s62, 1
        %s229 = smul.addr %s228, 16
        %s230 = scalar_lea.vmem [#allocation5], %s229
        // Predicated region
        $region37: #{tpu_custom_call.1} parent=31 // pred_check
          %p231 = pneg %p75
        $region38: #{tpu_custom_call.1} parent=31 // pred_check_branch
          %233 = sbr.rel (%p231) target = $region40
        $region39: #{tpu_custom_call.1} parent=31 // pred_region
          %234 = dma.done %s227, 256
        $region40: #{tpu_custom_call.1} parent=31 // pred_fallthru
          _
        %s235 = sand.u32 %s36, 1
        %s236 = scalar_lea.sflag [#allocation3], %s235
        %s237 = sand.u32 %s36, 1
        %s238 = smul.addr %s237, 16
        %s239 = scalar_lea.vmem [#allocation2], %s238
        %p240 = pneg %p49
        %p241 = pneg %p46
        %s242 = sand.u32 %s62, 1
        %s243 = scalar_lea.sflag [#allocation6], %s242
        %s244 = sand.u32 %s62, 1
        %s245 = smul.addr %s244, 16
        %s246 = scalar_lea.vmem [#allocation5], %s245
        %p247 = pneg %p75
        %p248 = pneg %p72
        %p249 = pneg %p96
        %p250 = pneg %p93
        %p251 = pneg %p122
        %p252 = pneg %p119
        %s253 = sand.u32 %s109, 1
        %s254 = scalar_lea.sflag [#allocation4], %s253
        %s255 = sand.u32 %s109, 1
        %s256 = scalar_lea.vmem [#allocation7], %s255
        %p257 = pneg %p148
        %p258 = pneg %p145
        %s259 = sand.u32 %s135, 1
        %s260 = scalar_lea.sflag [#allocation9], %s259
        %s261 = sand.u32 %s135, 1
        %s262 = scalar_lea.vmem [#allocation8], %s261
        %v263 = vld [vmem:[%s2] sm:$0x1]
        %v264 = vmul.f32 %v263, 25.0
        %v266 = vlaneseq
        %v267 = vshrl.u32 %v266, 7
        %v268 = vsub.s32 0, %v267
        %v269 = vrot.slane %v264, %v268
        %v271 = vld [vmem:[%s230] sm:$0xff]
        %v272 = vmul.f32 %v271, 10.0
        %273 = vmax.xlane.f32.xlu0 %v272
        %v274 = vpop.xlane.xlu0 %273
        %v275 = vsub.f32 %v272, %v274
        %v276 = vmul.f32 %v275, 1.442695
        %v277 = vpow.pop %v276
        %278 = vmatprep.subr.mxu0 0.0
        %279 = vmatpush1.msra.mxu0 1.0
        %280 = vmatprep.subr.mxu0 0.0
        %281 = vmatpush1.msra.mxu0 1.0
        %282 = vmatprep.subr.mxu0 0.0
        %283 = vmatpush1.msra.mxu0 1.0
        %284 = vmatprep.subr.mxu0 0.0
        %285 = vmatpush1.msra.mxu0 1.0
        %286 = vmatprep.subr.mxu0 0.0
        %287 = vmatpush1.msra.mxu0 1.0
        %288 = vmatprep.subr.mxu0 0.0
        %289 = vmatpush1.msra.mxu0 1.0
        %290 = vmatprep.subr.mxu0 0.0
        %291 = vmatpush1.msra.mxu0 1.0
        %292 = vmatprep.subr.mxu0 0.0
        %293 = vmatpush1.msra.mxu0 1.0
        %294 = vmatprep.subr.mxu0 0.0
        %295 = vmatpush1.msra.mxu0 1.0
        %296 = vmatprep.subr.mxu0 0.0
        %297 = vmatpush1.msra.mxu0 1.0
        %298 = vmatprep.subr.mxu0 0.0
        %299 = vmatpush1.msra.mxu0 1.0
        %300 = vmatprep.subr.mxu0 0.0
        %301 = vmatpush1.msra.mxu0 1.0
        %302 = vmatprep.subr.mxu0 0.0
        %303 = vmatpush1.msra.mxu0 1.0
        %304 = vmatprep.subr.mxu0 0.0
        %305 = vmatpush1.msra.mxu0 1.0
        %306 = vmatprep.subr.mxu0 0.0
        %307 = vmatpush1.msra.mxu0 1.0
        %308 = vmatprep.subr.mxu0 0.0
        %309 = vmatpush1.msra.mxu0 1.0
        %310 = vmatprep.subr.mxu0 0.0
        %311 = vmatpush1.msra.mxu0 0.0
        %312 = vmatprep.subr.mxu0 0.0
        %313 = vmatpush1.msra.mxu0 0.0
        %314 = vmatprep.subr.mxu0 0.0
        %315 = vmatpush1.msra.mxu0 0.0
        %316 = vmatprep.subr.mxu0 0.0
        %317 = vmatpush1.msra.mxu0 0.0
        %318 = vmatprep.subr.mxu0 0.0
        %319 = vmatpush1.msra.mxu0 0.0
        %320 = vmatprep.subr.mxu0 0.0
        %321 = vmatpush1.msra.mxu0 0.0
        %322 = vmatprep.subr.mxu0 0.0
        %323 = vmatpush1.msra.mxu0 0.0
        %324 = vmatprep.subr.mxu0 0.0
        %325 = vmatpush1.msra.mxu0 0.0
        %326 = vmatprep.subr.mxu0 0.0
        %327 = vmatpush1.msra.mxu0 0.0
        %328 = vmatprep.subr.mxu0 0.0
        %329 = vmatpush1.msra.mxu0 0.0
        %330 = vmatprep.subr.mxu0 0.0
        %331 = vmatpush1.msra.mxu0 0.0
        %332 = vmatprep.subr.mxu0 0.0
        %333 = vmatpush1.msra.mxu0 0.0
        %334 = vmatprep.subr.mxu0 0.0
        %335 = vmatpush1.msra.mxu0 0.0
        %336 = vmatprep.subr.mxu0 0.0
        %337 = vmatpush1.msra.mxu0 0.0
        %338 = vmatprep.subr.mxu0 0.0
        %339 = vmatpush1.msra.mxu0 0.0
        %340 = vmatprep.subr.mxu0 0.0
        %341 = vmatpush1.msra.mxu0 0.0
        %342 = vmatprep.mubr.f32.mxu0 0.0
        %343 = vmatmul.mubr.f32.gmra.mrb[0].mxu0 %v277
        %v344 = vpop.f32.mrb[0].mxu0
        %v345 = vadd.f32 0.0, %v344
        %v346 = vpop.f32.mrb[0].mxu0
        %347 = vdwg.mxu0
        %v348 = vlog2.pop %v345
        %v349 = vmul.f32 %v348, 0.6931472
        %s350 = scalar_lea.vmem %s230, 8 [#allocation5]
        %v351 = vld [vmem:[%s350] sm:$0xff]
        %v352 = vmul.f32 %v351, 10.0
        %353 = vmax.xlane.f32.xlu0 %v352
        %v354 = vpop.xlane.xlu0 %353
        %v355 = vsub.f32 %v352, %v354
        %v356 = vmul.f32 %v355, 1.442695
        %v357 = vpow.pop %v356
        %358 = vmatprep.subr.mxu0 0.0
        %359 = vmatpush1.msra.mxu0 1.0
        %360 = vmatprep.subr.mxu0 0.0
        %361 = vmatpush1.msra.mxu0 1.0
        %362 = vmatprep.subr.mxu0 0.0
        %363 = vmatpush1.msra.mxu0 1.0
        %364 = vmatprep.subr.mxu0 0.0
        %365 = vmatpush1.msra.mxu0 1.0
        %366 = vmatprep.subr.mxu0 0.0
        %367 = vmatpush1.msra.mxu0 1.0
        %368 = vmatprep.subr.mxu0 0.0
        %369 = vmatpush1.msra.mxu0 1.0
        %370 = vmatprep.subr.mxu0 0.0
        %371 = vmatpush1.msra.mxu0 1.0
        %372 = vmatprep.subr.mxu0 0.0
        %373 = vmatpush1.msra.mxu0 1.0
        %374 = vmatprep.subr.mxu0 0.0
        %375 = vmatpush1.msra.mxu0 1.0
        %376 = vmatprep.subr.mxu0 0.0
        %377 = vmatpush1.msra.mxu0 1.0
        %378 = vmatprep.subr.mxu0 0.0
        %379 = vmatpush1.msra.mxu0 1.0
        %380 = vmatprep.subr.mxu0 0.0
        %381 = vmatpush1.msra.mxu0 1.0
        %382 = vmatprep.subr.mxu0 0.0
        %383 = vmatpush1.msra.mxu0 1.0
        %384 = vmatprep.subr.mxu0 0.0
        %385 = vmatpush1.msra.mxu0 1.0
        %386 = vmatprep.subr.mxu0 0.0
        %387 = vmatpush1.msra.mxu0 1.0
        %388 = vmatprep.subr.mxu0 0.0
        %389 = vmatpush1.msra.mxu0 1.0
        %390 = vmatprep.subr.mxu0 0.0
        %391 = vmatpush1.msra.mxu0 0.0
        %392 = vmatprep.subr.mxu0 0.0
        %393 = vmatpush1.msra.mxu0 0.0
        %394 = vmatprep.subr.mxu0 0.0
        %395 = vmatpush1.msra.mxu0 0.0
        %396 = vmatprep.subr.mxu0 0.0
        %397 = vmatpush1.msra.mxu0 0.0
        %398 = vmatprep.subr.mxu0 0.0
        %399 = vmatpush1.msra.mxu0 0.0
        %400 = vmatprep.subr.mxu0 0.0
        %401 = vmatpush1.msra.mxu0 0.0
        %402 = vmatprep.subr.mxu0 0.0
        %403 = vmatpush1.msra.mxu0 0.0
        %404 = vmatprep.subr.mxu0 0.0
        %405 = vmatpush1.msra.mxu0 0.0
        %406 = vmatprep.subr.mxu0 0.0
        %407 = vmatpush1.msra.mxu0 0.0
        %408 = vmatprep.subr.mxu0 0.0
        %409 = vmatpush1.msra.mxu0 0.0
        %410 = vmatprep.subr.mxu0 0.0
        %411 = vmatpush1.msra.mxu0 0.0
        %412 = vmatprep.subr.mxu0 0.0
        %413 = vmatpush1.msra.mxu0 0.0
        %414 = vmatprep.subr.mxu0 0.0
        %415 = vmatpush1.msra.mxu0 0.0
        %416 = vmatprep.subr.mxu0 0.0
        %417 = vmatpush1.msra.mxu0 0.0
        %418 = vmatprep.subr.mxu0 0.0
        %419 = vmatpush1.msra.mxu0 0.0
        %420 = vmatprep.subr.mxu0 0.0
        %421 = vmatpush1.msra.mxu0 0.0
        %422 = vmatprep.mubr.f32.mxu0 0.0
        %423 = vmatmul.mubr.f32.gmra.mrb[0].mxu0 %v357
        %v424 = vpop.f32.mrb[0].mxu0
        %v425 = vadd.f32 0.0, %v424
        %v426 = vpop.f32.mrb[0].mxu0
        %427 = vdwg.mxu0
        %v428 = vlog2.pop %v425
        %v429 = vmul.f32 %v428, 0.6931472
        %v430 = vld [vmem:[%s221] sm:$0xff]
        %s431 = scalar_lea.vmem %s221, 8 [#allocation2]
        %v432 = vld [vmem:[%s431] sm:$0xff]
        %v433 = vadd.f32 %v430, %v432
        %v434 = vrot.slane %v433, 4
        %v435 = vadd.f32 %v433, %v434
        %v436 = vrot.slane %v435, 2
        %v437 = vadd.f32 %v435, %v436
        %v438 = vrot.slane %v437, 1
        %v439 = vadd.f32 %v437, %v438
        %440 = vst [vmem:[%s262] sm:$0x1] %v439
        %v441 = vmul.f32 %v430, 25.0
        %v442 = vsub.f32 %v441, %v269
        %443 = vmax.xlane.f32.xlu0 %v442
        %v444 = vpop.xlane.xlu0 %443
        %v445 = vsub.f32 %v442, %v444
        %v446 = vmul.f32 %v445, 1.442695
        %v447 = vpow.pop %v446
        %448 = vmatprep.subr.mxu0 0.0
        %449 = vmatpush1.msra.mxu0 1.0
        %450 = vmatprep.subr.mxu0 0.0
        %451 = vmatpush1.msra.mxu0 1.0
        %452 = vmatprep.subr.mxu0 0.0
        %453 = vmatpush1.msra.mxu0 1.0
        %454 = vmatprep.subr.mxu0 0.0
        %455 = vmatpush1.msra.mxu0 1.0
        %456 = vmatprep.subr.mxu0 0.0
        %457 = vmatpush1.msra.mxu0 1.0
        %458 = vmatprep.subr.mxu0 0.0
        %459 = vmatpush1.msra.mxu0 1.0
        %460 = vmatprep.subr.mxu0 0.0
        %461 = vmatpush1.msra.mxu0 1.0
        %462 = vmatprep.subr.mxu0 0.0
        %463 = vmatpush1.msra.mxu0 1.0
        %464 = vmatprep.subr.mxu0 0.0
        %465 = vmatpush1.msra.mxu0 1.0
        %466 = vmatprep.subr.mxu0 0.0
        %467 = vmatpush1.msra.mxu0 1.0
        %468 = vmatprep.subr.mxu0 0.0
        %469 = vmatpush1.msra.mxu0 1.0
        %470 = vmatprep.subr.mxu0 0.0
        %471 = vmatpush1.msra.mxu0 1.0
        %472 = vmatprep.subr.mxu0 0.0
        %473 = vmatpush1.msra.mxu0 1.0
        %474 = vmatprep.subr.mxu0 0.0
        %475 = vmatpush1.msra.mxu0 1.0
        %476 = vmatprep.subr.mxu0 0.0
        %477 = vmatpush1.msra.mxu0 1.0
        %478 = vmatprep.subr.mxu0 0.0
        %479 = vmatpush1.msra.mxu0 1.0
        %480 = vmatprep.subr.mxu0 0.0
        %481 = vmatpush1.msra.mxu0 0.0
        %482 = vmatprep.subr.mxu0 0.0
        %483 = vmatpush1.msra.mxu0 0.0
        %484 = vmatprep.subr.mxu0 0.0
        %485 = vmatpush1.msra.mxu0 0.0
        %486 = vmatprep.subr.mxu0 0.0
        %487 = vmatpush1.msra.mxu0 0.0
        %488 = vmatprep.subr.mxu0 0.0
        %489 = vmatpush1.msra.mxu0 0.0
        %490 = vmatprep.subr.mxu0 0.0
        %491 = vmatpush1.msra.mxu0 0.0
        %492 = vmatprep.subr.mxu0 0.0
        %493 = vmatpush1.msra.mxu0 0.0
        %494 = vmatprep.subr.mxu0 0.0
        %495 = vmatpush1.msra.mxu0 0.0
        %496 = vmatprep.subr.mxu0 0.0
        %497 = vmatpush1.msra.mxu0 0.0
        %498 = vmatprep.subr.mxu0 0.0
        %499 = vmatpush1.msra.mxu0 0.0
        %500 = vmatprep.subr.mxu0 0.0
        %501 = vmatpush1.msra.mxu0 0.0
        %502 = vmatprep.subr.mxu0 0.0
        %503 = vmatpush1.msra.mxu0 0.0
        %504 = vmatprep.subr.mxu0 0.0
        %505 = vmatpush1.msra.mxu0 0.0
        %506 = vmatprep.subr.mxu0 0.0
        %507 = vmatpush1.msra.mxu0 0.0
        %508 = vmatprep.subr.mxu0 0.0
        %509 = vmatpush1.msra.mxu0 0.0
        %510 = vmatprep.subr.mxu0 0.0
        %511 = vmatpush1.msra.mxu0 0.0
        %512 = vmatprep.mubr.f32.mxu0 0.0
        %513 = vmatmul.mubr.f32.gmra.mrb[0].mxu0 %v447
        %v514 = vpop.f32.mrb[0].mxu0
        %v515 = vadd.f32 0.0, %v514
        %v516 = vpop.f32.mrb[0].mxu0
        %517 = vdwg.mxu0
        %v518 = vrcp.pop %v515
        %v519 = vmul.f32 %v447, %v355
        %520 = vmatprep.subr.mxu0 0.0
        %521 = vmatpush1.msra.mxu0 1.0
        %522 = vmatprep.subr.mxu0 0.0
        %523 = vmatpush1.msra.mxu0 1.0
        %524 = vmatprep.subr.mxu0 0.0
        %525 = vmatpush1.msra.mxu0 1.0
        %526 = vmatprep.subr.mxu0 0.0
        %527 = vmatpush1.msra.mxu0 1.0
        %528 = vmatprep.subr.mxu0 0.0
        %529 = vmatpush1.msra.mxu0 1.0
        %530 = vmatprep.subr.mxu0 0.0
        %531 = vmatpush1.msra.mxu0 1.0
        %532 = vmatprep.subr.mxu0 0.0
        %533 = vmatpush1.msra.mxu0 1.0
        %534 = vmatprep.subr.mxu0 0.0
        %535 = vmatpush1.msra.mxu0 1.0
        %536 = vmatprep.subr.mxu0 0.0
        %537 = vmatpush1.msra.mxu0 1.0
        %538 = vmatprep.subr.mxu0 0.0
        %539 = vmatpush1.msra.mxu0 1.0
        %540 = vmatprep.subr.mxu0 0.0
        %541 = vmatpush1.msra.mxu0 1.0
        %542 = vmatprep.subr.mxu0 0.0
        %543 = vmatpush1.msra.mxu0 1.0
        %544 = vmatprep.subr.mxu0 0.0
        %545 = vmatpush1.msra.mxu0 1.0
        %546 = vmatprep.subr.mxu0 0.0
        %547 = vmatpush1.msra.mxu0 1.0
        %548 = vmatprep.subr.mxu0 0.0
        %549 = vmatpush1.msra.mxu0 1.0
        %550 = vmatprep.subr.mxu0 0.0
        %551 = vmatpush1.msra.mxu0 1.0
        %552 = vmatprep.subr.mxu0 0.0
        %553 = vmatpush1.msra.mxu0 0.0
        %554 = vmatprep.subr.mxu0 0.0
        %555 = vmatpush1.msra.mxu0 0.0
        %556 = vmatprep.subr.mxu0 0.0
        %557 = vmatpush1.msra.mxu0 0.0
        %558 = vmatprep.subr.mxu0 0.0
        %559 = vmatpush1.msra.mxu0 0.0
        %560 = vmatprep.subr.mxu0 0.0
        %561 = vmatpush1.msra.mxu0 0.0
        %562 = vmatprep.subr.mxu0 0.0
        %563 = vmatpush1.msra.mxu0 0.0
        %564 = vmatprep.subr.mxu0 0.0
        %565 = vmatpush1.msra.mxu0 0.0
        %566 = vmatprep.subr.mxu0 0.0
        %567 = vmatpush1.msra.mxu0 0.0
        %568 = vmatprep.subr.mxu0 0.0
        %569 = vmatpush1.msra.mxu0 0.0
        %570 = vmatprep.subr.mxu0 0.0
        %571 = vmatpush1.msra.mxu0 0.0
        %572 = vmatprep.subr.mxu0 0.0
        %573 = vmatpush1.msra.mxu0 0.0
        %574 = vmatprep.subr.mxu0 0.0
        %575 = vmatpush1.msra.mxu0 0.0
        %576 = vmatprep.subr.mxu0 0.0
        %577 = vmatpush1.msra.mxu0 0.0
        %578 = vmatprep.subr.mxu0 0.0
        %579 = vmatpush1.msra.mxu0 0.0
        %580 = vmatprep.subr.mxu0 0.0
        %581 = vmatpush1.msra.mxu0 0.0
        %582 = vmatprep.subr.mxu0 0.0
        %583 = vmatpush1.msra.mxu0 0.0
        %584 = vmatprep.mubr.f32.mxu0 0.0
        %585 = vmatmul.mubr.f32.gmra.mrb[0].mxu0 %v519
        %v586 = vpop.f32.mrb[0].mxu0
        %v587 = vadd.f32 0.0, %v586
        %v588 = vpop.f32.mrb[0].mxu0
        %589 = vdwg.mxu0
        %v590 = vmul.f32 %v587, %v518
        %v591 = vsub.f32 %v590, %v429
        %v592 = vadd.f32 %v591, 0.0
        %v593 = vmul.f32 %v432, 25.0
        %v594 = vsub.f32 %v593, %v269
        %595 = vmax.xlane.f32.xlu0 %v594
        %v596 = vpop.xlane.xlu0 %595
        %v597 = vsub.f32 %v594, %v596
        %v598 = vmul.f32 %v597, 1.442695
        %v599 = vpow.pop %v598
        %600 = vmatprep.subr.mxu0 0.0
        %601 = vmatpush1.msra.mxu0 1.0
        %602 = vmatprep.subr.mxu0 0.0
        %603 = vmatpush1.msra.mxu0 1.0
        %604 = vmatprep.subr.mxu0 0.0
        %605 = vmatpush1.msra.mxu0 1.0
        %606 = vmatprep.subr.mxu0 0.0
        %607 = vmatpush1.msra.mxu0 1.0
        %608 = vmatprep.subr.mxu0 0.0
        %609 = vmatpush1.msra.mxu0 1.0
        %610 = vmatprep.subr.mxu0 0.0
        %611 = vmatpush1.msra.mxu0 1.0
        %612 = vmatprep.subr.mxu0 0.0
        %613 = vmatpush1.msra.mxu0 1.0
        %614 = vmatprep.subr.mxu0 0.0
        %615 = vmatpush1.msra.mxu0 1.0
        %616 = vmatprep.subr.mxu0 0.0
        %617 = vmatpush1.msra.mxu0 1.0
        %618 = vmatprep.subr.mxu0 0.0
        %619 = vmatpush1.msra.mxu0 1.0
        %620 = vmatprep.subr.mxu0 0.0
        %621 = vmatpush1.msra.mxu0 1.0
        %622 = vmatprep.subr.mxu0 0.0
        %623 = vmatpush1.msra.mxu0 1.0
        %624 = vmatprep.subr.mxu0 0.0
        %625 = vmatpush1.msra.mxu0 1.0
        %626 = vmatprep.subr.mxu0 0.0
        %627 = vmatpush1.msra.mxu0 1.0
        %628 = vmatprep.subr.mxu0 0.0
        %629 = vmatpush1.msra.mxu0 1.0
        %630 = vmatprep.subr.mxu0 0.0
        %631 = vmatpush1.msra.mxu0 1.0
        %632 = vmatprep.subr.mxu0 0.0
        %633 = vmatpush1.msra.mxu0 0.0
        %634 = vmatprep.subr.mxu0 0.0
        %635 = vmatpush1.msra.mxu0 0.0
        %636 = vmatprep.subr.mxu0 0.0
        %637 = vmatpush1.msra.mxu0 0.0
        %638 = vmatprep.subr.mxu0 0.0
        %639 = vmatpush1.msra.mxu0 0.0
        %640 = vmatprep.subr.mxu0 0.0
        %641 = vmatpush1.msra.mxu0 0.0
        %642 = vmatprep.subr.mxu0 0.0
        %643 = vmatpush1.msra.mxu0 0.0
        %644 = vmatprep.subr.mxu0 0.0
        %645 = vmatpush1.msra.mxu0 0.0
        %646 = vmatprep.subr.mxu0 0.0
        %647 = vmatpush1.msra.mxu0 0.0
        %648 = vmatprep.subr.mxu0 0.0
        %649 = vmatpush1.msra.mxu0 0.0
        %650 = vmatprep.subr.mxu0 0.0
        %651 = vmatpush1.msra.mxu0 0.0
        %652 = vmatprep.subr.mxu0 0.0
        %653 = vmatpush1.msra.mxu0 0.0
        %654 = vmatprep.subr.mxu0 0.0
        %655 = vmatpush1.msra.mxu0 0.0
        %656 = vmatprep.subr.mxu0 0.0
        %657 = vmatpush1.msra.mxu0 0.0
        %658 = vmatprep.subr.mxu0 0.0
        %659 = vmatpush1.msra.mxu0 0.0
        %660 = vmatprep.subr.mxu0 0.0
        %661 = vmatpush1.msra.mxu0 0.0
        %662 = vmatprep.subr.mxu0 0.0
        %663 = vmatpush1.msra.mxu0 0.0
        %664 = vmatprep.mubr.f32.mxu0 0.0
        %665 = vmatmul.mubr.f32.gmra.mrb[0].mxu0 %v599
        %v666 = vpop.f32.mrb[0].mxu0
        %v667 = vadd.f32 0.0, %v666
        %v668 = vpop.f32.mrb[0].mxu0
        %669 = vdwg.mxu0
        %v670 = vrcp.pop %v667
        %v671 = vmul.f32 %v599, %v275
        %672 = vmatprep.subr.mxu0 0.0
        %673 = vmatpush1.msra.mxu0 1.0
        %674 = vmatprep.subr.mxu0 0.0
        %675 = vmatpush1.msra.mxu0 1.0
        %676 = vmatprep.subr.mxu0 0.0
        %677 = vmatpush1.msra.mxu0 1.0
        %678 = vmatprep.subr.mxu0 0.0
        %679 = vmatpush1.msra.mxu0 1.0
        %680 = vmatprep.subr.mxu0 0.0
        %681 = vmatpush1.msra.mxu0 1.0
        %682 = vmatprep.subr.mxu0 0.0
        %683 = vmatpush1.msra.mxu0 1.0
        %684 = vmatprep.subr.mxu0 0.0
        %685 = vmatpush1.msra.mxu0 1.0
        %686 = vmatprep.subr.mxu0 0.0
        %687 = vmatpush1.msra.mxu0 1.0
        %688 = vmatprep.subr.mxu0 0.0
        %689 = vmatpush1.msra.mxu0 1.0
        %690 = vmatprep.subr.mxu0 0.0
        %691 = vmatpush1.msra.mxu0 1.0
        %692 = vmatprep.subr.mxu0 0.0
        %693 = vmatpush1.msra.mxu0 1.0
        %694 = vmatprep.subr.mxu0 0.0
        %695 = vmatpush1.msra.mxu0 1.0
        %696 = vmatprep.subr.mxu0 0.0
        %697 = vmatpush1.msra.mxu0 1.0
        %698 = vmatprep.subr.mxu0 0.0
        %699 = vmatpush1.msra.mxu0 1.0
        %700 = vmatprep.subr.mxu0 0.0
        %701 = vmatpush1.msra.mxu0 1.0
        %702 = vmatprep.subr.mxu0 0.0
        %703 = vmatpush1.msra.mxu0 1.0
        %704 = vmatprep.subr.mxu0 0.0
        %705 = vmatpush1.msra.mxu0 0.0
        %706 = vmatprep.subr.mxu0 0.0
        %707 = vmatpush1.msra.mxu0 0.0
        %708 = vmatprep.subr.mxu0 0.0
        %709 = vmatpush1.msra.mxu0 0.0
        %710 = vmatprep.subr.mxu0 0.0
        %711 = vmatpush1.msra.mxu0 0.0
        %712 = vmatprep.subr.mxu0 0.0
        %713 = vmatpush1.msra.mxu0 0.0
        %714 = vmatprep.subr.mxu0 0.0
        %715 = vmatpush1.msra.mxu0 0.0
        %716 = vmatprep.subr.mxu0 0.0
        %717 = vmatpush1.msra.mxu0 0.0
        %718 = vmatprep.subr.mxu0 0.0
        %719 = vmatpush1.msra.mxu0 0.0
        %720 = vmatprep.subr.mxu0 0.0
        %721 = vmatpush1.msra.mxu0 0.0
        %722 = vmatprep.subr.mxu0 0.0
        %723 = vmatpush1.msra.mxu0 0.0
        %724 = vmatprep.subr.mxu0 0.0
        %725 = vmatpush1.msra.mxu0 0.0
        %726 = vmatprep.subr.mxu0 0.0
        %727 = vmatpush1.msra.mxu0 0.0
        %728 = vmatprep.subr.mxu0 0.0
        %729 = vmatpush1.msra.mxu0 0.0
        %730 = vmatprep.subr.mxu0 0.0
        %731 = vmatpush1.msra.mxu0 0.0
        %732 = vmatprep.subr.mxu0 0.0
        %733 = vmatpush1.msra.mxu0 0.0
        %734 = vmatprep.subr.mxu0 0.0
        %735 = vmatpush1.msra.mxu0 0.0
        %736 = vmatprep.mubr.f32.mxu0 0.0
        %737 = vmatmul.mubr.f32.gmra.mrb[0].mxu0 %v671
        %v738 = vpop.f32.mrb[0].mxu0
        %v739 = vadd.f32 0.0, %v738
        %v740 = vpop.f32.mrb[0].mxu0
        %741 = vdwg.mxu0
        %v742 = vmul.f32 %v739, %v670
        %v743 = vsub.f32 %v742, %v349
        %v744 = vadd.f32 %v592, %v743
        %vm745 = vcmask 7168
        %v746 = vsel %vm745, %v744, 0.0
        %747 = vadd.xlane.f32.xlu0 %v746
        %v748 = vpop.xlane.xlu0 %747
        %v749 = vrot.slane %v748, 4
        %v750 = vadd.f32 %v748, %v749
        %v751 = vrot.slane %v750, 2
        %v752 = vadd.f32 %v750, %v751
        %v753 = vrot.slane %v752, 1
        %v754 = vadd.f32 %v752, %v753
        %s755 = vtos %v754
        %v756 = vstv %s755
        %757 = vst [vmem:[%s256] sm:$0x1] %v756
        %s758 = sand.u32 %s109, 1
        %s759 = scalar_lea.sflag [#allocation4], %s758
        %s760 = sand.u32 %s109, 1
        %s761 = scalar_lea.vmem [#allocation7], %s760
        %s762 = sand.u32 %s135, 1
        %s763 = scalar_lea.sflag [#allocation9], %s762
        %s764 = sand.u32 %s135, 1
        %s765 = scalar_lea.vmem [#allocation8], %s764
        // Predicated region
        $region41: #{tpu_custom_call.1} parent=31 // pred_check
          %p766 = pneg %p119
        $region42: #{tpu_custom_call.1} parent=31 // pred_check_branch
          %768 = sbr.rel (%p766) target = $region44
        $region43: #{tpu_custom_call.1} parent=31 // pred_region
          %s770 = ssub.s32 16, 16
          %771 = vsyncadd %s759, %s770
          %s772 = smul.addr %s28, 16
          %s773 = scalar_lea.hbm %s3, %s772
          %s775 = sshll.u32 %s761, 4
          %s776 = int_to_ptr.vmem [resolvable:$true] %s775
          %778 = dma.vmem_to_hbm [thread:$0]  %s776, 16, %s773, %s759
        $region44: #{tpu_custom_call.1} parent=31 // pred_fallthru
          _
        // Predicated region
        $region45: #{tpu_custom_call.1} parent=31 // pred_check
          %p779 = pneg %p145
        $region46: #{tpu_custom_call.1} parent=31 // pred_check_branch
          %781 = sbr.rel (%p779) target = $region48
        $region47: #{tpu_custom_call.1} parent=31 // pred_region
          %s783 = ssub.s32 16, 16
          %784 = vsyncadd %s763, %s783
          %s785 = smul.addr %s28, 16
          %s786 = scalar_lea.hbm %s4, %s785
          %s788 = sshll.u32 %s765, 4
          %s789 = int_to_ptr.vmem [resolvable:$true] %s788
          %791 = dma.vmem_to_hbm [thread:$0]  %s789, 16, %s786, %s763
        $region48: #{tpu_custom_call.1} parent=31 // pred_fallthru
          _
      $region32: #{tpu_custom_call.1} parent=5 // pred_fallthru
        _
      %p792 = scmp.le.s32.totalorder 2, %s23
      // Predicated region
      $region49: #{tpu_custom_call.1} parent=5 // pred_check
        %p793 = pneg %p792
      $region50: #{tpu_custom_call.1} parent=5 // pred_check_branch
        %795 = sbr.rel (%p793) target = $region52
      $region51: #{tpu_custom_call.1} parent=5 // pred_region
        %s796 = ssub.s32 %s23, 2
        // Predicated region
        $region53: #{tpu_custom_call.1} parent=51 // pred_check
          %p797 = pneg %p125
        $region54: #{tpu_custom_call.1} parent=51 // pred_check_branch
          %799 = sbr.rel (%p797) target = $region56
        $region55: #{tpu_custom_call.1} parent=51 // pred_region
          %s800 = sand.u32 %s110, 1
          %s801 = scalar_lea.sflag [#allocation4], %s800
          %s802 = sand.u32 %s110, 1
          %s803 = scalar_lea.vmem [#allocation7], %s802
          %804 = dma.done %s801, 16
        $region56: #{tpu_custom_call.1} parent=51 // pred_fallthru
          _
        // Predicated region
        $region57: #{tpu_custom_call.1} parent=51 // pred_check
          %p805 = pneg %p151
        $region58: #{tpu_custom_call.1} parent=51 // pred_check_branch
          %807 = sbr.rel (%p805) target = $region60
        $region59: #{tpu_custom_call.1} parent=51 // pred_region
          %s808 = sand.u32 %s136, 1
          %s809 = scalar_lea.sflag [#allocation9], %s808
          %s810 = sand.u32 %s136, 1
          %s811 = scalar_lea.vmem [#allocation8], %s810
          %812 = dma.done %s809, 16
        $region60: #{tpu_custom_call.1} parent=51 // pred_fallthru
          _
      $region52: #{tpu_custom_call.1} parent=5 // pred_fallthru
        _
    $region6: #{tpu_custom_call.1} parent=1 // loop_footer
      %s27 = sadd.s32 1, %s23
    $region7: #{tpu_custom_call.1} parent=1 // loop_footer_branch
      %22 = sbr.rel target = $region3
    $region8: #{tpu_custom_call.1} parent=1 // loop_exit
      _
    %813 = vsyncpa [#allocation3], 1
    %s814 = scalar_lea.sflag [#allocation3], 1
    %815 = vsyncpa %s814, 1
    %816 = vsyncpa [#allocation6], 1
    %s817 = scalar_lea.sflag [#allocation6], 1
    %818 = vsyncpa %s817, 1
    %819 = vsyncpa [#allocation4], 1
    %s820 = scalar_lea.sflag [#allocation4], 1
    %821 = vsyncpa %s820, 1
    %822 = vsyncpa [#allocation9], 1
    %s823 = scalar_lea.sflag [#allocation9], 1
    %824 = vsyncpa %s823, 1

</llo_original>
